<compile_context>
chip_gen: v5e
topology: v5e:2x2
jax: 0.10.0
libtpu: 0.0.40
codegen_flags: <defaults>
</compile_context>

<pallas_src>
import jax
import jax.numpy as jnp
from jax.experimental import pallas as pl
from jax.experimental.pallas import tpu as pltpu


INPUT_SIZE = 110     # must be >= 105 for the canSplit slice State[54:105]
HIDDEN_SIZE = 32
OUTPUT_SIZE = 4      # ..., output[-2] = "double", output[-1] = "split"

PAD_HID = 128        # lane-dense padded hidden width
PAD_OUT = 8          # small padded output width (real outputs = first 4)
MAX_TILE_B = 512     # rows per grid step (cap keeps VMEM use well under limits)


# ----------------------------------------------------------------------------
# Kernel
# ----------------------------------------------------------------------------
def blackjack_kernel(x_ref, w1_ref, w2_ref, w3_ref, b12_ref, oc_ref, masks_ref,
                     o_ref):
    # x arrives bf16 (exact for small nonnegative integer card counts);
    # upcast once for both the matmuls and the mask arithmetic.
    x = x_ref[...].astype(jnp.float32)                     # (TB, 110)

    # ---- MLP hot path (f32 weights, f32 accumulation; FLOPs are negligible) ----
    h = jnp.dot(x, w1_ref[...], preferred_element_type=jnp.float32) + b12_ref[0:1, :]
    h = jnp.maximum(h, 0.0)
    h = jnp.dot(h, w2_ref[...], preferred_element_type=jnp.float32) + b12_ref[1:2, :]
    h = jnp.maximum(h, 0.0)
    out = jnp.dot(h, w3_ref[...], preferred_element_type=jnp.float32) + oc_ref[0:1, :]
    # out: (TB, PAD_OUT)

    # ---- action masking from precomputed constant mask rows ----
    low_mask = masks_ref[0:1, :]       # 1.0 for idx < 51 else 0.0         (1, 110)
    split_mask = masks_ref[1:2, :]     # idx for idx < 51, 1e6 for 54<=idx<105

    pos = (x > 0.0).astype(jnp.float32)
    card_sum = jnp.sum(x * low_mask, axis=-1, keepdims=True)        # (TB, 1)
    split_stat = jnp.sum(pos * split_mask, axis=-1, keepdims=True)  # (TB, 1)

    can_double = card_sum <= 2.0       # sum(state[0:51]) <= 2
    can_split = split_stat == 2.0      # no dealer card (else >=1e6) and index-sum==2

    dbl_col = oc_ref[1:2, :] > 0.0     # (1, PAD_OUT) indicator of the "double" column
    spl_col = oc_ref[2:3, :] > 0.0     # (1, PAD_OUT) indicator of the "split" column

    neg_inf = jnp.float32(-jnp.inf)
    out = jnp.where(jnp.logical_and(dbl_col, jnp.logical_not(can_double)), neg_inf, out)
    out = jnp.where(jnp.logical_and(spl_col, jnp.logical_not(can_split)), neg_inf, out)

    o_ref[...] = out


# ----------------------------------------------------------------------------
# Parameter construction / packing
# ----------------------------------------------------------------------------
def init_params(key, input_size, hidden_size, output_size):
    """PyTorch-Linear-style init: U(-1/sqrt(fan_in), 1/sqrt(fan_in)).
    Weights stored as (in, out) so the kernel does x @ W."""
    ks = jax.random.split(key, 6)

    def lin(kw, kb, fan_in, fan_out):
        bound = 1.0 / jnp.sqrt(jnp.float32(fan_in))
        w = jax.random.uniform(kw, (fan_in, fan_out), jnp.float32, -bound, bound)
        b = jax.random.uniform(kb, (1, fan_out), jnp.float32, -bound, bound)
        return w, b

    w1, b1 = lin(ks[0], ks[1], input_size, hidden_size)
    w2, b2 = lin(ks[2], ks[3], hidden_size, hidden_size)
    w3, b3 = lin(ks[4], ks[5], hidden_size, output_size)
    return w1, b1, w2, b2, w3, b3


def pad_params(raw_params):
    """Zero-pad weights to kernel shapes (f32) and fold constants into tables."""
    w1, b1, w2, b2, w3, b3 = raw_params

    def pad2(a, rows, cols):
        out = jnp.zeros((rows, cols), jnp.float32)
        return out.at[:a.shape[0], :a.shape[1]].set(a.astype(jnp.float32))

    w1p = pad2(w1, INPUT_SIZE, PAD_HID)       # (110, 128)
    w2p = pad2(w2, PAD_HID, PAD_HID)          # (128, 128)
    w3p = pad2(w3, PAD_HID, PAD_OUT)          # (128, 8)

    bias12 = jnp.zeros((2, PAD_HID), jnp.float32)
    bias12 = bias12.at[0, :b1.shape[1]].set(b1[0])
    bias12 = bias12.at[1, :b2.shape[1]].set(b2[0])

    outconst = jnp.zeros((3, PAD_OUT), jnp.float32)
    outconst = outconst.at[0, :b3.shape[1]].set(b3[0])       # b3
    outconst = outconst.at[1, OUTPUT_SIZE - 2].set(1.0)      # "double" column
    outconst = outconst.at[2, OUTPUT_SIZE - 1].set(1.0)      # "split" column

    idx = jnp.arange(INPUT_SIZE, dtype=jnp.float32)
    low_mask = jnp.where(idx < 51, 1.0, 0.0)
    split_mask = (jnp.where(idx < 51, idx, 0.0)
                  + jnp.where((idx >= 54) & (idx < 105), 1e6, 0.0))
    masks = jnp.stack([low_mask, split_mask], axis=0)         # (2, 110)

    return w1p, w2p, w3p, bias12, outconst, masks


# ----------------------------------------------------------------------------
# Forward wrapper
# ----------------------------------------------------------------------------
def _round_up(n, m):
    return ((n + m - 1) // m) * m


def _pick_tile(bsz):
    """Batch tile: big for throughput, but aim for >=2 grid steps (v7x has 2 TCs)
    and collapse to an 8-row tile for single-state / tiny-batch queries."""
    b8 = max(8, _round_up(bsz, 8))
    half = _round_up((b8 + 1) // 2, 8)
    tile = max(8, min(MAX_TILE_B, half))
    return tile, _round_up(b8, tile)


def blackjack_forward(x, padded_params):
    """x: (B, INPUT_SIZE) batch of states or (INPUT_SIZE,) single state.
    State entries must be nonnegative integer card counts (exact in bf16)."""
    w1, w2, w3, bias12, outconst, masks = padded_params
    single = (x.ndim == 1)
    x2 = jnp.atleast_2d(x)
    if x2.dtype != jnp.bfloat16:
        x2 = x2.astype(jnp.bfloat16)      # halves the input DMA; counts stay exact
    bsz, feat = x2.shape
    assert feat == INPUT_SIZE

    tile_b, bsz_pad = _pick_tile(bsz)
    if bsz_pad != bsz:
        x2 = jnp.pad(x2, ((0, bsz_pad - bsz), (0, 0)))   # rows only, only if ragged

    out = pl.pallas_call(
        blackjack_kernel,
        out_shape=jax.ShapeDtypeStruct((bsz_pad, PAD_OUT), jnp.float32),
        grid=(bsz_pad // tile_b,),
        in_specs=[
            pl.BlockSpec((tile_b, INPUT_SIZE), lambda i: (i, 0)),    # x tile (bf16)
            pl.BlockSpec((INPUT_SIZE, PAD_HID), lambda i: (0, 0)),   # w1
            pl.BlockSpec((PAD_HID, PAD_HID), lambda i: (0, 0)),      # w2
            pl.BlockSpec((PAD_HID, PAD_OUT), lambda i: (0, 0)),      # w3
            pl.BlockSpec((2, PAD_HID), lambda i: (0, 0)),            # [b1; b2]
            pl.BlockSpec((3, PAD_OUT), lambda i: (0, 0)),            # [b3; dbl; spl]
            pl.BlockSpec((2, INPUT_SIZE), lambda i: (0, 0)),         # mask table
        ],
        out_specs=pl.BlockSpec((tile_b, PAD_OUT), lambda i: (i, 0)),
        compiler_params=pltpu.CompilerParams(
            dimension_semantics=("parallel",)),        # shard batch on v7x's 2 TCs
    )(x2, w1, w2, w3, bias12, outconst, masks)

    out = out[:bsz, :OUTPUT_SIZE]
    return out[0] if single else out


# ----------------------------------------------------------------------------
# Pure-JAX reference (f32, independent of the kernel's packing)
# ----------------------------------------------------------------------------
def blackjack_reference(x_row, raw_params):
    w1, b1, w2, b2, w3, b3 = raw_params
    xr = x_row.astype(jnp.bfloat16).astype(jnp.float32)  # same input rounding as kernel
    hp = jax.lax.Precision.HIGHEST
    h = jnp.maximum(jnp.dot(xr, w1, precision=hp) + b1[0], 0.0)
    h = jnp.maximum(jnp.dot(h, w2, precision=hp) + b2[0], 0.0)
    out = jnp.dot(h, w3, precision=hp) + b3[0]

    can_double = jnp.sum(x_row[0:51]) <= 2.0
    any_dealer = jnp.any(x_row[54:105] > 0.0)
    idx_sum = jnp.sum(jnp.where(x_row[0:51] > 0.0,
                                jnp.arange(51, dtype=jnp.float32), 0.0))
    can_split = jnp.logical_and(jnp.logical_not(any_dealer), idx_sum == 2.0)

    out = out.at[-2].set(jnp.where(can_double, out[-2], -jnp.inf))
    out = out.at[-1].set(jnp.where(can_split, out[-1], -jnp.inf))
    return out


def _check(out, ref, atol=2e-2, rtol=2e-2):
    finite_o = jnp.isfinite(out)
    finite_r = jnp.isfinite(ref)
    assert bool(jnp.all(finite_o == finite_r)), "inf-mask mismatch"
    ok = jnp.allclose(jnp.where(finite_r, out, 0.0),
                      jnp.where(finite_r, ref, 0.0), atol=atol, rtol=rtol)
    assert bool(ok), "value mismatch"


if __name__ == "__main__":
    key = jax.random.PRNGKey(0)
    k_param, k_x = jax.random.split(key)

    raw = init_params(k_param, INPUT_SIZE, HIDDEN_SIZE, OUTPUT_SIZE)
    params = pad_params(raw)

    # Deterministic sparse 0/1 "card count" style states, batched (ragged batch
    # size exercises the row-padding path). Rows 0-2 are hand-crafted to hit
    # every canDouble/canSplit branch.
    B = 300
    x = (jax.random.uniform(k_x, (B, INPUT_SIZE)) > 0.9).astype(jnp.float32)
    base = jnp.zeros((INPUT_SIZE,), jnp.float32)
    x = x.at[0].set(base.at[2].set(1.0))                                   # double+split ok
    x = x.at[1].set(base.at[2].set(1.0).at[60].set(1.0))                   # dealer card -> no split
    x = x.at[2].set(base.at[1].set(1.0).at[5].set(1.0).at[7].set(1.0))     # 3 cards -> no double

    out = jax.block_until_ready(blackjack_forward(x, params))
    assert out.shape == (B, OUTPUT_SIZE)
    ref = jax.vmap(lambda r: blackjack_reference(r, raw))(x)
    _check(out, ref)

    # Single-state path (1-D input, exactly like the PyTorch module's usage).
    out1 = jax.block_until_ready(blackjack_forward(x[0], params))
    assert out1.shape == (OUTPUT_SIZE,)
    _check(out1, blackjack_reference(x[0], raw))

    print("KERNEL_OK")
</pallas_src>

<mosaic_0001>
module attributes {stable_mosaic.version = 11 : i64} {
  func.func @blackjack_kernel(%arg0: i32, %arg1: memref<152x110xbf16, #tpu.memory_space<vmem>>, %arg2: memref<110x128xf32, #tpu.memory_space<vmem>>, %arg3: memref<128x128xf32, #tpu.memory_space<vmem>>, %arg4: memref<128x8xf32, #tpu.memory_space<vmem>>, %arg5: memref<2x128xf32, #tpu.memory_space<vmem>>, %arg6: memref<3x8xf32, #tpu.memory_space<vmem>>, %arg7: memref<2x110xf32, #tpu.memory_space<vmem>>, %arg8: memref<152x8xf32, #tpu.memory_space<vmem>>) attributes {dimension_semantics = [#tpu.dimension_semantics<parallel>], iteration_bounds = array<i64: 2>, scalar_prefetch = 0 : i64, scratch_operands = 0 : i64, tpu.core_type = #tpu.core_type<tc>, window_params = [{transform_indices = @transform_0, window_bounds = array<i64: 152, 110>}, {pipeline_mode = #tpu.pipeline_mode<synchronous>, transform_indices = @transform_1, window_bounds = array<i64: 110, 128>}, {pipeline_mode = #tpu.pipeline_mode<synchronous>, transform_indices = @transform_2, window_bounds = array<i64: 128, 128>}, {pipeline_mode = #tpu.pipeline_mode<synchronous>, transform_indices = @transform_3, window_bounds = array<i64: 128, 8>}, {pipeline_mode = #tpu.pipeline_mode<synchronous>, transform_indices = @transform_4, window_bounds = array<i64: 2, 128>}, {pipeline_mode = #tpu.pipeline_mode<synchronous>, transform_indices = @transform_5, window_bounds = array<i64: 3, 8>}, {pipeline_mode = #tpu.pipeline_mode<synchronous>, transform_indices = @transform_6, window_bounds = array<i64: 2, 110>}, {transform_indices = @transform_7, window_bounds = array<i64: 152, 8>}]} {
    %c0 = arith.constant 0 : index
    %c0_0 = arith.constant 0 : index
    %0 = vector.load %arg1[%c0, %c0_0] : memref<152x110xbf16, #tpu.memory_space<vmem>>, vector<152x110xbf16>
    %1 = arith.extf %0 : vector<152x110xbf16> to vector<152x110xf32>
    %c0_1 = arith.constant 0 : index
    %c0_2 = arith.constant 0 : index
    %2 = vector.load %arg2[%c0_1, %c0_2] : memref<110x128xf32, #tpu.memory_space<vmem>>, vector<110x128xf32>
    %cst = arith.constant dense<0.000000e+00> : vector<152x128xf32>
    %3 = tpu.matmul %1, %2, %cst {dimension_numbers = #tpu.dot_dimension_numbers<[1], [0], [0], [1], [0, 0, 1, 1], [], []>} : vector<152x110xf32>, vector<110x128xf32>, vector<152x128xf32> -> vector<152x128xf32>
    %c0_3 = arith.constant 0 : index
    %c0_4 = arith.constant 0 : index
    %4 = vector.load %arg5[%c0_3, %c0_4] : memref<2x128xf32, #tpu.memory_space<vmem>>, vector<1x128xf32>
    %5 = vector.broadcast %4 : vector<1x128xf32> to vector<152x128xf32>
    %6 = arith.addf %3, %5 : vector<152x128xf32>
    %cst_5 = arith.constant 0.000000e+00 : f32
    %7 = vector.broadcast %cst_5 : f32 to vector<152x128xf32>
    %8 = arith.maximumf %6, %7 : vector<152x128xf32>
    %c0_6 = arith.constant 0 : index
    %c0_7 = arith.constant 0 : index
    %9 = vector.load %arg3[%c0_6, %c0_7] : memref<128x128xf32, #tpu.memory_space<vmem>>, vector<128x128xf32>
    %cst_8 = arith.constant dense<0.000000e+00> : vector<152x128xf32>
    %10 = tpu.matmul %8, %9, %cst_8 {dimension_numbers = #tpu.dot_dimension_numbers<[1], [0], [0], [1], [0, 0, 1, 1], [], []>} : vector<152x128xf32>, vector<128x128xf32>, vector<152x128xf32> -> vector<152x128xf32>
    %c1 = arith.constant 1 : index
    %c0_9 = arith.constant 0 : index
    %11 = vector.load %arg5[%c1, %c0_9] : memref<2x128xf32, #tpu.memory_space<vmem>>, vector<1x128xf32>
    %12 = vector.broadcast %11 : vector<1x128xf32> to vector<152x128xf32>
    %13 = arith.addf %10, %12 : vector<152x128xf32>
    %cst_10 = arith.constant 0.000000e+00 : f32
    %14 = vector.broadcast %cst_10 : f32 to vector<152x128xf32>
    %15 = arith.maximumf %13, %14 : vector<152x128xf32>
    %c0_11 = arith.constant 0 : index
    %c0_12 = arith.constant 0 : index
    %16 = vector.load %arg4[%c0_11, %c0_12] : memref<128x8xf32, #tpu.memory_space<vmem>>, vector<128x8xf32>
    %cst_13 = arith.constant dense<0.000000e+00> : vector<152x8xf32>
    %17 = tpu.matmul %15, %16, %cst_13 {dimension_numbers = #tpu.dot_dimension_numbers<[1], [0], [0], [1], [0, 0, 1, 1], [], []>} : vector<152x128xf32>, vector<128x8xf32>, vector<152x8xf32> -> vector<152x8xf32>
    %c0_14 = arith.constant 0 : index
    %c0_15 = arith.constant 0 : index
    %18 = vector.load %arg6[%c0_14, %c0_15] : memref<3x8xf32, #tpu.memory_space<vmem>>, vector<1x8xf32>
    %19 = vector.broadcast %18 : vector<1x8xf32> to vector<152x8xf32>
    %20 = arith.addf %17, %19 : vector<152x8xf32>
    %c0_16 = arith.constant 0 : index
    %c0_17 = arith.constant 0 : index
    %21 = vector.load %arg7[%c0_16, %c0_17] : memref<2x110xf32, #tpu.memory_space<vmem>>, vector<1x110xf32>
    %c1_18 = arith.constant 1 : index
    %c0_19 = arith.constant 0 : index
    %22 = vector.load %arg7[%c1_18, %c0_19] : memref<2x110xf32, #tpu.memory_space<vmem>>, vector<1x110xf32>
    %cst_20 = arith.constant 0.000000e+00 : f32
    %23 = vector.broadcast %cst_20 : f32 to vector<152x110xf32>
    %24 = arith.cmpf ogt, %1, %23 : vector<152x110xf32>
    %25 = arith.extui %24 : vector<152x110xi1> to vector<152x110xi32>
    %26 = arith.sitofp %25 : vector<152x110xi32> to vector<152x110xf32>
    %27 = vector.broadcast %21 : vector<1x110xf32> to vector<152x110xf32>
    %28 = arith.mulf %1, %27 : vector<152x110xf32>
    %cst_21 = arith.constant dense<0.000000e+00> : vector<152xf32>
    %29 = vector.multi_reduction <add>, %28, %cst_21 [1] : vector<152x110xf32> to vector<152xf32>
    %30 = vector.shape_cast %29 : vector<152xf32> to vector<152x1xf32>
    %31 = vector.broadcast %22 : vector<1x110xf32> to vector<152x110xf32>
    %32 = arith.mulf %26, %31 : vector<152x110xf32>
    %cst_22 = arith.constant dense<0.000000e+00> : vector<152xf32>
    %33 = vector.multi_reduction <add>, %32, %cst_22 [1] : vector<152x110xf32> to vector<152xf32>
    %34 = vector.shape_cast %33 : vector<152xf32> to vector<152x1xf32>
    %cst_23 = arith.constant 2.000000e+00 : f32
    %35 = vector.broadcast %cst_23 : f32 to vector<152x1xf32>
    %36 = arith.cmpf ole, %30, %35 : vector<152x1xf32>
    %cst_24 = arith.constant 2.000000e+00 : f32
    %37 = vector.broadcast %cst_24 : f32 to vector<152x1xf32>
    %38 = arith.cmpf oeq, %34, %37 : vector<152x1xf32>
    %c1_25 = arith.constant 1 : index
    %c0_26 = arith.constant 0 : index
    %39 = vector.load %arg6[%c1_25, %c0_26] : memref<3x8xf32, #tpu.memory_space<vmem>>, vector<1x8xf32>
    %cst_27 = arith.constant 0.000000e+00 : f32
    %40 = vector.broadcast %cst_27 : f32 to vector<1x8xf32>
    %41 = arith.cmpf ogt, %39, %40 : vector<1x8xf32>
    %c2 = arith.constant 2 : index
    %c0_28 = arith.constant 0 : index
    %42 = vector.load %arg6[%c2, %c0_28] : memref<3x8xf32, #tpu.memory_space<vmem>>, vector<1x8xf32>
    %cst_29 = arith.constant 0.000000e+00 : f32
    %43 = vector.broadcast %cst_29 : f32 to vector<1x8xf32>
    %44 = arith.cmpf ogt, %42, %43 : vector<1x8xf32>
    %cst_30 = arith.constant dense<true> : vector<152x1xi1>
    %45 = arith.xori %36, %cst_30 : vector<152x1xi1>
    %46 = vector.broadcast %41 : vector<1x8xi1> to vector<152x8xi1>
    %47 = vector.broadcast %45 : vector<152x1xi1> to vector<152x8xi1>
    %48 = arith.andi %46, %47 : vector<152x8xi1>
    %cst_31 = arith.constant 0xFF800000 : f32
    %49 = vector.broadcast %cst_31 : f32 to vector<152x8xf32>
    %50 = arith.select %48, %49, %20 : vector<152x8xi1>, vector<152x8xf32>
    %cst_32 = arith.constant dense<true> : vector<152x1xi1>
    %51 = arith.xori %38, %cst_32 : vector<152x1xi1>
    %52 = vector.broadcast %44 : vector<1x8xi1> to vector<152x8xi1>
    %53 = vector.broadcast %51 : vector<152x1xi1> to vector<152x8xi1>
    %54 = arith.andi %52, %53 : vector<152x8xi1>
    %cst_33 = arith.constant 0xFF800000 : f32
    %55 = vector.broadcast %cst_33 : f32 to vector<152x8xf32>
    %56 = arith.select %54, %55, %50 : vector<152x8xi1>, vector<152x8xf32>
    %c0_34 = arith.constant 0 : index
    %c0_35 = arith.constant 0 : index
    %57 = vector.load %arg8[%c0_34, %c0_35] : memref<152x8xf32, #tpu.memory_space<vmem>>, vector<152x8xf32>
    tpu.vector_store %arg8[%c0_34, %c0_35], %56 {strides = array<i32>} : memref<152x8xf32, #tpu.memory_space<vmem>>, vector<152x8xf32>,
    return
  }
  func.func @transform_0(%arg0: i32) -> (i32, i32) {
    %c0_i32 = arith.constant 0 : i32
    %c0_i32_0 = arith.constant 0 : i32
    return %arg0, %c0_i32 : i32, i32
  }
  func.func @transform_1(%arg0: i32) -> (i32, i32) {
    %c0_i32 = arith.constant 0 : i32
    %c0_i32_0 = arith.constant 0 : i32
    %c0_i32_1 = arith.constant 0 : i32
    return %c0_i32, %c0_i32_0 : i32, i32
  }
  func.func @transform_2(%arg0: i32) -> (i32, i32) {
    %c0_i32 = arith.constant 0 : i32
    %c0_i32_0 = arith.constant 0 : i32
    %c0_i32_1 = arith.constant 0 : i32
    return %c0_i32, %c0_i32_0 : i32, i32
  }
  func.func @transform_3(%arg0: i32) -> (i32, i32) {
    %c0_i32 = arith.constant 0 : i32
    %c0_i32_0 = arith.constant 0 : i32
    %c0_i32_1 = arith.constant 0 : i32
    return %c0_i32, %c0_i32_0 : i32, i32
  }
  func.func @transform_4(%arg0: i32) -> (i32, i32) {
    %c0_i32 = arith.constant 0 : i32
    %c0_i32_0 = arith.constant 0 : i32
    %c0_i32_1 = arith.constant 0 : i32
    return %c0_i32, %c0_i32_0 : i32, i32
  }
  func.func @transform_5(%arg0: i32) -> (i32, i32) {
    %c0_i32 = arith.constant 0 : i32
    %c0_i32_0 = arith.constant 0 : i32
    %c0_i32_1 = arith.constant 0 : i32
    return %c0_i32, %c0_i32_0 : i32, i32
  }
  func.func @transform_6(%arg0: i32) -> (i32, i32) {
    %c0_i32 = arith.constant 0 : i32
    %c0_i32_0 = arith.constant 0 : i32
    %c0_i32_1 = arith.constant 0 : i32
    return %c0_i32, %c0_i32_0 : i32, i32
  }
  func.func @transform_7(%arg0: i32) -> (i32, i32) {
    %c0_i32 = arith.constant 0 : i32
    %c0_i32_0 = arith.constant 0 : i32
    return %arg0, %c0_i32 : i32, i32
  }
}

</mosaic_0001>

<llo_original>
// kernel: tpu_custom_call.1
$region0: #{tpu_custom_call.1}
  #allocation0 [shape = 'u32[]', space=smem, size = 0x4, offset = 0x4, fixed_abs, tag = 'smem constant byte address 0x4 - core index']
  #allocation1 [shape = 'u32[72,128]{1,0:T(1,128)}', space=vmem, size = 0x9000, scoped, tag = 'internal scratch']
  %s0 = inlined_call_operand.hbm [shape: bf16[304,110], index: 0, kind: input, shape index: {}]
  %s1 = inlined_call_operand.hbm [shape: f32[110,128], index: 1, kind: input, shape index: {}]
  %s2 = inlined_call_operand.vmem [shape: f32[128,128], index: 2, kind: input, shape index: {}]
  %s3 = inlined_call_operand.vmem [shape: f32[128,8], index: 3, kind: input, shape index: {}]
  %s4 = inlined_call_operand.vmem [shape: f32[2,128], index: 4, kind: input, shape index: {}]
  %s5 = inlined_call_operand.vmem [shape: f32[3,8], index: 5, kind: input, shape index: {}]
  %s6 = inlined_call_operand.vmem [shape: f32[2,110], index: 6, kind: input, shape index: {}]
  %s7 = inlined_call_operand.vmem [shape: f32[304,8], index: 7, kind: output, shape index: {}]
  %s8 = sld [smem:[#allocation0]]
  $region69: #{tpu_custom_call.1} parent=0
    _
  %s10 = ssub.s32 1, %s8
  %s11 = scalar_select 0, %s10, %s8
  $region1: #{tpu_custom_call.1} parent=0
    #allocation2 [shape = 'u8[77824]{0}', space=vmem, size = 0x13000, scoped, tag = 'input window, operand 0']
    #allocation3 [shape = 's32[2]{0}', space=sflag, size = 0x8, scoped, tag = 'scoped memory for tpu_custom_call.1']
    #allocation4 [shape = 'u8[57344]{0}', space=vmem, size = 0xe000, scoped, tag = 'input window, operand 1, single buffered']
    #allocation5 [shape = 's32[1]{0}', space=sflag, size = 0x4, scoped, tag = 'scoped memory for tpu_custom_call.1']
    %12 = vsyncpa [#allocation3], 0
    %s13 = scalar_lea.sflag [#allocation3], 1
    %14 = vsyncpa %s13, 0
    %15 = vsyncpa [#allocation5], 0
    loop: start=0, step=1, limit=4
    $region2: #{tpu_custom_call.1} parent=1 // loop_pre_header
      _
    $region3: #{tpu_custom_call.1} parent=1 // loop_header
      %s17 = sphi 0, %s21
      %p18 = scmp.ge.s32.totalorder %s17, 4
      %s27 = sphi 0, %s29
      %s30 = sphi 0, %s27
      %s31 = sphi 0, %s30
      %s47 = sphi 0, %s31
      %s51 = sphi 0, %s51
      %s53 = sphi 0, %s51
      %s54 = sphi 0, %s53
      %s68 = sphi 0, %s54
      %s72 = sphi 0, %s72
      %s74 = sphi 0, %s72
      %s75 = sphi 0, %s74
      %s89 = sphi 0, %s75
      %s93 = sphi 0, %s93
      %s95 = sphi 0, %s93
      %s96 = sphi 0, %s95
      %s110 = sphi 0, %s96
      %s114 = sphi 0, %s114
      %s116 = sphi 0, %s114
      %s117 = sphi 0, %s116
      %s131 = sphi 0, %s117
      %s135 = sphi 0, %s135
      %s137 = sphi 0, %s135
      %s138 = sphi 0, %s137
      %s152 = sphi 0, %s138
      %s156 = sphi 0, %s156
      %s158 = sphi 0, %s156
      %s159 = sphi 0, %s158
      %s173 = sphi 0, %s159
      %s179 = sphi 0, %s181
      %s182 = sphi 0, %s179
      %s183 = sphi 0, %s182
      %s199 = sphi 0, %s183
    $region4: #{tpu_custom_call.1} parent=1 // loop_header_branch
      %20 = sbr.rel (%p18) target = $region8
    $region5: #{tpu_custom_call.1} parent=1 // loop_body
      %s22 = ssub.s32 %s17, 1
      %s23 = ssub.s32 %s17, 2
      %s24 = sadd.s32 %s17, 1
      %s25 = ssub.s32 %s17, %s24
      %p26 = scmp.eq.s32.totalorder %s25, 0
      %s28 = sadd.s32 %s27, 1
      %s29 = scalar_select %p26, %s27, %s28
      %p32 = pneg %p26
      %p33 = scmp.eq.s32.totalorder %s17, 1
      %p34 = por %p32, %p33
      %p35 = scmp.ne.s32.totalorder %s27, %s30
      %p36 = scmp.eq.s32.totalorder %s17, 0
      %p37 = por %p35, %p36
      %p38 = scmp.ne.s32.totalorder %s27, %s30
      %p39 = scmp.eq.s32.totalorder %s22, 1
      %p40 = por %p38, %p39
      %p41 = scmp.ne.s32.totalorder %s30, %s31
      %p42 = scmp.eq.s32.totalorder %s22, 0
      %p43 = por %p41, %p42
      %p44 = scmp.ne.s32.totalorder %s30, %s31
      %p45 = scmp.eq.s32.totalorder %s23, 1
      %p46 = por %p44, %p45
      %p48 = scmp.ne.s32.totalorder %s31, %s47
      %p49 = scmp.eq.s32.totalorder %s23, 0
      %p50 = por %p48, %p49
      %s52 = sadd.s32 %s51, 1
      %p55 = scmp.eq.s32.totalorder %s17, 1
      %p56 = scmp.ne.s32.totalorder %s51, %s53
      %p57 = scmp.eq.s32.totalorder %s17, 0
      %p58 = por %p56, %p57
      %p59 = scmp.ne.s32.totalorder %s51, %s53
      %p60 = scmp.eq.s32.totalorder %s22, 1
      %p61 = por %p59, %p60
      %p62 = scmp.ne.s32.totalorder %s53, %s54
      %p63 = scmp.eq.s32.totalorder %s22, 0
      %p64 = por %p62, %p63
      %p65 = scmp.ne.s32.totalorder %s53, %s54
      %p66 = scmp.eq.s32.totalorder %s23, 1
      %p67 = por %p65, %p66
      %p69 = scmp.ne.s32.totalorder %s54, %s68
      %p70 = scmp.eq.s32.totalorder %s23, 0
      %p71 = por %p69, %p70
      %s73 = sadd.s32 %s72, 1
      %p76 = scmp.eq.s32.totalorder %s17, 1
      %p77 = scmp.ne.s32.totalorder %s72, %s74
      %p78 = scmp.eq.s32.totalorder %s17, 0
      %p79 = por %p77, %p78
      %p80 = scmp.ne.s32.totalorder %s72, %s74
      %p81 = scmp.eq.s32.totalorder %s22, 1
      %p82 = por %p80, %p81
      %p83 = scmp.ne.s32.totalorder %s74, %s75
      %p84 = scmp.eq.s32.totalorder %s22, 0
      %p85 = por %p83, %p84
      %p86 = scmp.ne.s32.totalorder %s74, %s75
      %p87 = scmp.eq.s32.totalorder %s23, 1
      %p88 = por %p86, %p87
      %p90 = scmp.ne.s32.totalorder %s75, %s89
      %p91 = scmp.eq.s32.totalorder %s23, 0
      %p92 = por %p90, %p91
      %s94 = sadd.s32 %s93, 1
      %p97 = scmp.eq.s32.totalorder %s17, 1
      %p98 = scmp.ne.s32.totalorder %s93, %s95
      %p99 = scmp.eq.s32.totalorder %s17, 0
      %p100 = por %p98, %p99
      %p101 = scmp.ne.s32.totalorder %s93, %s95
      %p102 = scmp.eq.s32.totalorder %s22, 1
      %p103 = por %p101, %p102
      %p104 = scmp.ne.s32.totalorder %s95, %s96
      %p105 = scmp.eq.s32.totalorder %s22, 0
      %p106 = por %p104, %p105
      %p107 = scmp.ne.s32.totalorder %s95, %s96
      %p108 = scmp.eq.s32.totalorder %s23, 1
      %p109 = por %p107, %p108
      %p111 = scmp.ne.s32.totalorder %s96, %s110
      %p112 = scmp.eq.s32.totalorder %s23, 0
      %p113 = por %p111, %p112
      %s115 = sadd.s32 %s114, 1
      %p118 = scmp.eq.s32.totalorder %s17, 1
      %p119 = scmp.ne.s32.totalorder %s114, %s116
      %p120 = scmp.eq.s32.totalorder %s17, 0
      %p121 = por %p119, %p120
      %p122 = scmp.ne.s32.totalorder %s114, %s116
      %p123 = scmp.eq.s32.totalorder %s22, 1
      %p124 = por %p122, %p123
      %p125 = scmp.ne.s32.totalorder %s116, %s117
      %p126 = scmp.eq.s32.totalorder %s22, 0
      %p127 = por %p125, %p126
      %p128 = scmp.ne.s32.totalorder %s116, %s117
      %p129 = scmp.eq.s32.totalorder %s23, 1
      %p130 = por %p128, %p129
      %p132 = scmp.ne.s32.totalorder %s117, %s131
      %p133 = scmp.eq.s32.totalorder %s23, 0
      %p134 = por %p132, %p133
      %s136 = sadd.s32 %s135, 1
      %p139 = scmp.eq.s32.totalorder %s17, 1
      %p140 = scmp.ne.s32.totalorder %s135, %s137
      %p141 = scmp.eq.s32.totalorder %s17, 0
      %p142 = por %p140, %p141
      %p143 = scmp.ne.s32.totalorder %s135, %s137
      %p144 = scmp.eq.s32.totalorder %s22, 1
      %p145 = por %p143, %p144
      %p146 = scmp.ne.s32.totalorder %s137, %s138
      %p147 = scmp.eq.s32.totalorder %s22, 0
      %p148 = por %p146, %p147
      %p149 = scmp.ne.s32.totalorder %s137, %s138
      %p150 = scmp.eq.s32.totalorder %s23, 1
      %p151 = por %p149, %p150
      %p153 = scmp.ne.s32.totalorder %s138, %s152
      %p154 = scmp.eq.s32.totalorder %s23, 0
      %p155 = por %p153, %p154
      %s157 = sadd.s32 %s156, 1
      %p160 = scmp.eq.s32.totalorder %s17, 1
      %p161 = scmp.ne.s32.totalorder %s156, %s158
      %p162 = scmp.eq.s32.totalorder %s17, 0
      %p163 = por %p161, %p162
      %p164 = scmp.ne.s32.totalorder %s156, %s158
      %p165 = scmp.eq.s32.totalorder %s22, 1
      %p166 = por %p164, %p165
      %p167 = scmp.ne.s32.totalorder %s158, %s159
      %p168 = scmp.eq.s32.totalorder %s22, 0
      %p169 = por %p167, %p168
      %p170 = scmp.ne.s32.totalorder %s158, %s159
      %p171 = scmp.eq.s32.totalorder %s23, 1
      %p172 = por %p170, %p171
      %p174 = scmp.ne.s32.totalorder %s159, %s173
      %p175 = scmp.eq.s32.totalorder %s23, 0
      %p176 = por %p174, %p175
      %s177 = ssub.s32 %s17, %s24
      %p178 = scmp.eq.s32.totalorder %s177, 0
      %s180 = sadd.s32 %s179, 1
      %s181 = scalar_select %p178, %s179, %s180
      %p184 = pneg %p178
      %p185 = scmp.eq.s32.totalorder %s17, 1
      %p186 = por %p184, %p185
      %p187 = scmp.ne.s32.totalorder %s179, %s182
      %p188 = scmp.eq.s32.totalorder %s17, 0
      %p189 = por %p187, %p188
      %p190 = scmp.ne.s32.totalorder %s179, %s182
      %p191 = scmp.eq.s32.totalorder %s22, 1
      %p192 = por %p190, %p191
      %p193 = scmp.ne.s32.totalorder %s182, %s183
      %p194 = scmp.eq.s32.totalorder %s22, 0
      %p195 = por %p193, %p194
      %p196 = scmp.ne.s32.totalorder %s182, %s183
      %p197 = scmp.eq.s32.totalorder %s23, 1
      %p198 = por %p196, %p197
      %p200 = scmp.ne.s32.totalorder %s183, %s199
      %p201 = scmp.eq.s32.totalorder %s23, 0
      %p202 = por %p200, %p201
      %p203 = scmp.le.s32.totalorder 1, %s17
      %p204 = scmp.lt.s32.totalorder %s17, 3
      %p205 = pnand %p203, %p204
      %p206 = pneg %p205
      // Predicated region
      $region9: #{tpu_custom_call.1} parent=5 // pred_check
        _
      $region10: #{tpu_custom_call.1} parent=5 // pred_check_branch
        %208 = sbr.rel (%p205) target = $region12
      $region11: #{tpu_custom_call.1} parent=5 // pred_region
        %s209 = ssub.s32 %s17, 1
        // Predicated region
        $region13: #{tpu_custom_call.1} parent=11 // pred_check
          %p210 = pneg %p64
        $region14: #{tpu_custom_call.1} parent=11 // pred_check_branch
          %212 = sbr.rel (%p210) target = $region16
        $region15: #{tpu_custom_call.1} parent=11 // pred_region
          %214 = vsyncadd [#allocation5], 0
          %s215 = sshll.u32 %s1, 4
          %s216 = int_to_ptr.hbm [resolvable:$true] %s215
          %s217 = sshll.u32 [#allocation4], 4
          %s218 = int_to_ptr.vmem [resolvable:$true] %s217
          %223 = dma.hbm_to_vmem [thread:$0]  %s216, 1792, %s218, [#allocation5], 128, 128, 8
        $region16: #{tpu_custom_call.1} parent=11 // pred_fallthru
          _
        // Predicated region
        $region17: #{tpu_custom_call.1} parent=11 // pred_check
          %p224 = pneg %p85
        $region18: #{tpu_custom_call.1} parent=11 // pred_check_branch
          %226 = sbr.rel (%p224) target = $region20
        $region19: #{tpu_custom_call.1} parent=11 // pred_region
          _
        $region20: #{tpu_custom_call.1} parent=11 // pred_fallthru
          _
        // Predicated region
        $region21: #{tpu_custom_call.1} parent=11 // pred_check
          %p227 = pneg %p106
        $region22: #{tpu_custom_call.1} parent=11 // pred_check_branch
          %229 = sbr.rel (%p227) target = $region24
        $region23: #{tpu_custom_call.1} parent=11 // pred_region
          _
        $region24: #{tpu_custom_call.1} parent=11 // pred_fallthru
          _
        // Predicated region
        $region25: #{tpu_custom_call.1} parent=11 // pred_check
          %p230 = pneg %p127
        $region26: #{tpu_custom_call.1} parent=11 // pred_check_branch
          %232 = sbr.rel (%p230) target = $region28
        $region27: #{tpu_custom_call.1} parent=11 // pred_region
          _
        $region28: #{tpu_custom_call.1} parent=11 // pred_fallthru
          _
        // Predicated region
        $region29: #{tpu_custom_call.1} parent=11 // pred_check
          %p233 = pneg %p148
        $region30: #{tpu_custom_call.1} parent=11 // pred_check_branch
          %235 = sbr.rel (%p233) target = $region32
        $region31: #{tpu_custom_call.1} parent=11 // pred_region
          _
        $region32: #{tpu_custom_call.1} parent=11 // pred_fallthru
          _
        // Predicated region
        $region33: #{tpu_custom_call.1} parent=11 // pred_check
          %p236 = pneg %p169
        $region34: #{tpu_custom_call.1} parent=11 // pred_check_branch
          %238 = sbr.rel (%p236) target = $region36
        $region35: #{tpu_custom_call.1} parent=11 // pred_region
          _
        $region36: #{tpu_custom_call.1} parent=11 // pred_fallthru
          _
      $region12: #{tpu_custom_call.1} parent=5 // pred_fallthru
        _
      %p239 = scmp.lt.s32.totalorder %s17, 2
      // Predicated region
      $region37: #{tpu_custom_call.1} parent=5 // pred_check
        %p240 = pneg %p239
      $region38: #{tpu_custom_call.1} parent=5 // pred_check_branch
        %242 = sbr.rel (%p240) target = $region40
      $region39: #{tpu_custom_call.1} parent=5 // pred_region
        // Predicated region
        $region41: #{tpu_custom_call.1} parent=39 // pred_check
          %p243 = pneg %p37
        $region42: #{tpu_custom_call.1} parent=39 // pred_check_branch
          %245 = sbr.rel (%p243) target = $region44
        $region43: #{tpu_custom_call.1} parent=39 // pred_region
          %s246 = sand.u32 %s27, 1
          %s247 = scalar_lea.sflag [#allocation3], %s246
          %s248 = sand.u32 %s27, 1
          %s249 = smul.addr %s248, 76
          %s250 = scalar_lea.vmem [#allocation2], %s249
          %s251 = smul.u32 19, %s17
          %253 = vsyncadd %s247, 0
          %s254 = smul.addr %s251, 4
          %s255 = scalar_lea.hbm %s0, %s254
          %s256 = sshll.u32 %s255, 4
          %s257 = int_to_ptr.hbm [resolvable:$true] %s256
          %s258 = sshll.u32 %s250, 4
          %s259 = int_to_ptr.vmem [resolvable:$true] %s258
          %264 = dma.hbm_to_vmem [thread:$0]  %s257, 1216, %s259, %s247, 64, 64, 4
        $region44: #{tpu_custom_call.1} parent=39 // pred_fallthru
          _
      $region40: #{tpu_custom_call.1} parent=5 // pred_fallthru
        _
      %p265 = scmp.le.s32.totalorder 1, %s17
      %p266 = scmp.lt.s32.totalorder %s17, 3
      %p267 = pnand %p265, %p266
      %p268 = pneg %p267
      // Predicated region
      $region45: #{tpu_custom_call.1} parent=5 // pred_check
        _
      $region46: #{tpu_custom_call.1} parent=5 // pred_check_branch
        %270 = sbr.rel (%p267) target = $region48
      $region47: #{tpu_custom_call.1} parent=5 // pred_region
        %s271 = ssub.s32 %s17, 1
        %s272 = sand.u32 %s30, 1
        %s273 = scalar_lea.sflag [#allocation3], %s272
        %s274 = sand.u32 %s30, 1
        %s275 = smul.addr %s274, 76
        %s276 = scalar_lea.vmem [#allocation2], %s275
        // Predicated region
        $region49: #{tpu_custom_call.1} parent=47 // pred_check
          %p277 = pneg %p43
        $region50: #{tpu_custom_call.1} parent=47 // pred_check_branch
          %279 = sbr.rel (%p277) target = $region52
        $region51: #{tpu_custom_call.1} parent=47 // pred_region
          %281 = dma.done %s273, 1216
        $region52: #{tpu_custom_call.1} parent=47 // pred_fallthru
          _
        // Predicated region
        $region53: #{tpu_custom_call.1} parent=47 // pred_check
          %p282 = pneg %p64
        $region54: #{tpu_custom_call.1} parent=47 // pred_check_branch
          %284 = sbr.rel (%p282) target = $region56
        $region55: #{tpu_custom_call.1} parent=47 // pred_region
          %286 = dma.done [#allocation5], 1792
        $region56: #{tpu_custom_call.1} parent=47 // pred_fallthru
          _
        %s287 = sand.u32 %s30, 1
        %s288 = scalar_lea.sflag [#allocation3], %s287
        %s289 = sand.u32 %s30, 1
        %s290 = smul.addr %s289, 76
        %s291 = scalar_lea.vmem [#allocation2], %s290
        %p292 = pneg %p43
        %p293 = pneg %p40
        %p294 = pneg %p64
        %p295 = pneg %p61
        %p296 = pneg %p85
        %p297 = pneg %p82
        %p298 = pneg %p106
        %p299 = pneg %p103
        %p300 = pneg %p127
        %p301 = pneg %p124
        %p302 = pneg %p148
        %p303 = pneg %p145
        %p304 = pneg %p169
        %p305 = pneg %p166
        %p306 = pneg %p195
        %p307 = pneg %p192
        %s308 = smul.u32 19, %s22
        %p309 = scmp.lt.s32.totalorder %s308, 37
        %s310 = scalar_select %p309, %s308, 37
        %s311 = smul.addr %s310, 8
        %s312 = scalar_lea.vmem %s7, %s311
        %s313 = smul.u32 19, %s22
        %s314 = smul.u32 19, %s22
        %p315 = scmp.lt.s32.totalorder %s314, 37
        %s316 = scalar_select %p315, %s314, 37
        %s317 = smul.addr %s316, 8
        %s318 = scalar_lea.vmem %s7, %s317
        %s319 = smul.u32 19, %s22
        %v320 = vld [vmem:[%s276] sm:$0xf]
        %v321 = vld [vmem:[%s276 + $0x4] sm:$0xf]
        %v322 = vld [vmem:[%s276 + $0x8] sm:$0xf]
        %v323 = vld [vmem:[%s276 + $0xc] sm:$0xf]
        %v324 = vld [vmem:[%s276 + $0x10] sm:$0xf]
        %v325 = vld [vmem:[%s276 + $0x14] sm:$0xf]
        %v326 = vld [vmem:[%s276 + $0x18] sm:$0xf]
        %v327 = vld [vmem:[%s276 + $0x1c] sm:$0xf]
        %v328 = vld [vmem:[%s276 + $0x20] sm:$0xf]
        %v329 = vld [vmem:[%s276 + $0x24] sm:$0xf]
        %v330 = vld [vmem:[%s276 + $0x28] sm:$0xf]
        %v331 = vld [vmem:[%s276 + $0x2c] sm:$0xf]
        %v332 = vld [vmem:[%s276 + $0x30] sm:$0xf]
        %v333 = vld [vmem:[%s276 + $0x34] sm:$0xf]
        %v334 = vld [vmem:[%s276 + $0x38] sm:$0xf]
        %v335 = vld [vmem:[%s276 + $0x3c] sm:$0xf]
        %v336 = vld [vmem:[%s276 + $0x40] sm:$0xf]
        %v337 = vld [vmem:[%s276 + $0x44] sm:$0xf]
        %v338 = vld [vmem:[%s276 + $0x48] sm:$0xf]
        %v339 = vunpack.c.l.bf16 %v320
        %v340 = vunpack.c.l.bf16 %v321
        %v341 = vunpack.c.l.bf16 %v322
        %v342 = vunpack.c.l.bf16 %v323
        %v343 = vunpack.c.l.bf16 %v324
        %v344 = vunpack.c.l.bf16 %v325
        %v345 = vunpack.c.l.bf16 %v326
        %v346 = vunpack.c.l.bf16 %v327
        %v347 = vunpack.c.l.bf16 %v328
        %v348 = vunpack.c.l.bf16 %v329
        %v349 = vunpack.c.l.bf16 %v330
        %v350 = vunpack.c.l.bf16 %v331
        %v351 = vunpack.c.l.bf16 %v332
        %v352 = vunpack.c.l.bf16 %v333
        %v353 = vunpack.c.l.bf16 %v334
        %v354 = vunpack.c.l.bf16 %v335
        %v355 = vunpack.c.l.bf16 %v336
        %v356 = vunpack.c.l.bf16 %v337
        %v357 = vunpack.c.l.bf16 %v338
        %v358 = vld [vmem:[#allocation4] sm:$0xff]
        %v359 = vld [vmem:[#allocation4 + $0x8] sm:$0xff]
        %v360 = vld [vmem:[#allocation4 + $0x10] sm:$0xff]
        %v361 = vld [vmem:[#allocation4 + $0x18] sm:$0xff]
        %v362 = vld [vmem:[#allocation4 + $0x20] sm:$0xff]
        %v363 = vld [vmem:[#allocation4 + $0x28] sm:$0xff]
        %v364 = vld [vmem:[#allocation4 + $0x30] sm:$0xff]
        %v365 = vld [vmem:[#allocation4 + $0x38] sm:$0xff]
        %v366 = vld [vmem:[#allocation4 + $0x40] sm:$0xff]
        %v367 = vld [vmem:[#allocation4 + $0x48] sm:$0xff]
        %v368 = vld [vmem:[#allocation4 + $0x50] sm:$0xff]
        %v369 = vld [vmem:[#allocation4 + $0x58] sm:$0xff]
        %v370 = vld [vmem:[#allocation4 + $0x60] sm:$0xff]
        %v371 = vld [vmem:[#allocation4 + $0x68] sm:$0x3f]
        %v372 = vld [vmem:[%s4] sm:$0x1]
        %v373 = vperm.slane %v372, 0
        %vm374 = vcmask 900096
        %v376 = vsel %vm374, %v339, 0
        %v379 = vsel %vm374, %v340, 0
        %v382 = vsel %vm374, %v341, 0
        %v385 = vsel %vm374, %v342, 0
        %v388 = vsel %vm374, %v343, 0
        %v391 = vsel %vm374, %v344, 0
        %v394 = vsel %vm374, %v345, 0
        %v397 = vsel %vm374, %v346, 0
        %v400 = vsel %vm374, %v347, 0
        %v403 = vsel %vm374, %v348, 0
        %v406 = vsel %vm374, %v349, 0
        %v409 = vsel %vm374, %v350, 0
        %v412 = vsel %vm374, %v351, 0
        %v415 = vsel %vm374, %v352, 0
        %v418 = vsel %vm374, %v353, 0
        %v421 = vsel %vm374, %v354, 0
        %v424 = vsel %vm374, %v355, 0
        %v427 = vsel %vm374, %v356, 0
        %v430 = vsel %vm374, %v357, 0
        %vm432 = vcmask 1045504
        %v434 = vsel %vm432, %v371, 0
        %436 = vmatpush.msra.mxu0 0.0
        %437 = vmatpush.msra.mxu0 0.0
        %438 = vmatpush.msra.mxu0 %v434
        %439 = vmatpush.msra.mxu0 %v370
        %440 = vmatpush.msra.mxu0 %v369
        %441 = vmatpush.msra.mxu0 %v368
        %442 = vmatpush.msra.mxu0 %v367
        %443 = vmatpush.msra.mxu0 %v366
        %444 = vmatpush.msra.mxu0 %v365
        %445 = vmatpush.msra.mxu0 %v364
        %446 = vmatpush.msra.mxu0 %v363
        %447 = vmatpush.msra.mxu0 %v362
        %448 = vmatpush.msra.mxu0 %v361
        %449 = vmatpush.msra.mxu0 %v360
        %450 = vmatpush.msra.mxu0 %v359
        %451 = vmatpush.msra.mxu0 %v358
        %452 = vmatmul.f32.gmra.mxu0 %v376
        %v453 = vpop.f32.mrf.mxu0
        %v454 = vadd.f32 %v373, %v453
        %455 = vmatmul.f32.gmra.mxu0 %v379
        %v456 = vpop.f32.mrf.mxu0
        %v457 = vadd.f32 %v373, %v456
        %458 = vmatmul.f32.gmra.mxu0 %v382
        %v459 = vpop.f32.mrf.mxu0
        %v460 = vadd.f32 %v373, %v459
        %461 = vmatmul.f32.gmra.mxu0 %v385
        %v462 = vpop.f32.mrf.mxu0
        %v463 = vadd.f32 %v373, %v462
        %464 = vmatmul.f32.gmra.mxu0 %v388
        %v465 = vpop.f32.mrf.mxu0
        %v466 = vadd.f32 %v373, %v465
        %467 = vmatmul.f32.gmra.mxu0 %v391
        %v468 = vpop.f32.mrf.mxu0
        %v469 = vadd.f32 %v373, %v468
        %470 = vmatmul.f32.gmra.mxu0 %v394
        %v471 = vpop.f32.mrf.mxu0
        %v472 = vadd.f32 %v373, %v471
        %473 = vmatmul.f32.gmra.mxu0 %v397
        %v474 = vpop.f32.mrf.mxu0
        %v475 = vadd.f32 %v373, %v474
        %476 = vmatmul.f32.gmra.mxu0 %v400
        %v477 = vpop.f32.mrf.mxu0
        %v478 = vadd.f32 %v373, %v477
        %479 = vmatmul.f32.gmra.mxu0 %v403
        %v480 = vpop.f32.mrf.mxu0
        %v481 = vadd.f32 %v373, %v480
        %482 = vmatmul.f32.gmra.mxu0 %v406
        %v483 = vpop.f32.mrf.mxu0
        %v484 = vadd.f32 %v373, %v483
        %485 = vmatmul.f32.gmra.mxu0 %v409
        %v486 = vpop.f32.mrf.mxu0
        %v487 = vadd.f32 %v373, %v486
        %488 = vmatmul.f32.gmra.mxu0 %v412
        %v489 = vpop.f32.mrf.mxu0
        %v490 = vadd.f32 %v373, %v489
        %491 = vmatmul.f32.gmra.mxu0 %v415
        %v492 = vpop.f32.mrf.mxu0
        %v493 = vadd.f32 %v373, %v492
        %494 = vmatmul.f32.gmra.mxu0 %v418
        %v495 = vpop.f32.mrf.mxu0
        %v496 = vadd.f32 %v373, %v495
        %497 = vmatmul.f32.gmra.mxu0 %v421
        %v498 = vpop.f32.mrf.mxu0
        %v499 = vadd.f32 %v373, %v498
        %500 = vmatmul.f32.gmra.mxu0 %v424
        %v501 = vpop.f32.mrf.mxu0
        %v502 = vadd.f32 %v373, %v501
        %503 = vmatmul.f32.gmra.mxu0 %v427
        %v504 = vpop.f32.mrf.mxu0
        %v505 = vadd.f32 %v373, %v504
        %506 = vmatmul.f32.gmra.mxu0 %v430
        %v507 = vpop.f32.mrf.mxu0
        %v508 = vadd.f32 %v373, %v507
        %509 = vdwg.mxu0
        %v510 = vmax.f32 %v454, 0.0
        %v511 = vmax.f32 %v457, 0.0
        %v512 = vmax.f32 %v460, 0.0
        %v513 = vmax.f32 %v463, 0.0
        %v514 = vmax.f32 %v466, 0.0
        %v515 = vmax.f32 %v469, 0.0
        %v516 = vmax.f32 %v472, 0.0
        %v517 = vmax.f32 %v475, 0.0
        %v518 = vmax.f32 %v478, 0.0
        %v519 = vmax.f32 %v481, 0.0
        %v520 = vmax.f32 %v484, 0.0
        %v521 = vmax.f32 %v487, 0.0
        %v522 = vmax.f32 %v490, 0.0
        %v523 = vmax.f32 %v493, 0.0
        %v524 = vmax.f32 %v496, 0.0
        %v525 = vmax.f32 %v499, 0.0
        %v526 = vmax.f32 %v502, 0.0
        %v527 = vmax.f32 %v505, 0.0
        %v528 = vmax.f32 %v508, 0.0
        %v529 = vld [vmem:[%s2] sm:$0xff]
        %v530 = vld [vmem:[%s2 + $0x8] sm:$0xff]
        %v531 = vld [vmem:[%s2 + $0x10] sm:$0xff]
        %v532 = vld [vmem:[%s2 + $0x18] sm:$0xff]
        %v533 = vld [vmem:[%s2 + $0x20] sm:$0xff]
        %v534 = vld [vmem:[%s2 + $0x28] sm:$0xff]
        %v535 = vld [vmem:[%s2 + $0x30] sm:$0xff]
        %v536 = vld [vmem:[%s2 + $0x38] sm:$0xff]
        %v537 = vld [vmem:[%s2 + $0x40] sm:$0xff]
        %v538 = vld [vmem:[%s2 + $0x48] sm:$0xff]
        %v539 = vld [vmem:[%s2 + $0x50] sm:$0xff]
        %v540 = vld [vmem:[%s2 + $0x58] sm:$0xff]
        %v541 = vld [vmem:[%s2 + $0x60] sm:$0xff]
        %v542 = vld [vmem:[%s2 + $0x68] sm:$0xff]
        %v543 = vld [vmem:[%s2 + $0x70] sm:$0xff]
        %v544 = vld [vmem:[%s2 + $0x78] sm:$0xff]
        %v545 = vld [vmem:[%s4 + $0x1] sm:$0x1]
        %v546 = vperm.slane %v545, 0
        %547 = vmatpush.msra.mxu0 %v544
        %548 = vmatpush.msra.mxu0 %v543
        %549 = vmatpush.msra.mxu0 %v542
        %550 = vmatpush.msra.mxu0 %v541
        %551 = vmatpush.msra.mxu0 %v540
        %552 = vmatpush.msra.mxu0 %v539
        %553 = vmatpush.msra.mxu0 %v538
        %554 = vmatpush.msra.mxu0 %v537
        %555 = vmatpush.msra.mxu0 %v536
        %556 = vmatpush.msra.mxu0 %v535
        %557 = vmatpush.msra.mxu0 %v534
        %558 = vmatpush.msra.mxu0 %v533
        %559 = vmatpush.msra.mxu0 %v532
        %560 = vmatpush.msra.mxu0 %v531
        %561 = vmatpush.msra.mxu0 %v530
        %562 = vmatpush.msra.mxu0 %v529
        %563 = vmatmul.f32.gmra.mxu0 %v510
        %v564 = vpop.f32.mrf.mxu0
        %v565 = vadd.f32 %v546, %v564
        %566 = vmatmul.f32.gmra.mxu0 %v511
        %v567 = vpop.f32.mrf.mxu0
        %v568 = vadd.f32 %v546, %v567
        %569 = vmatmul.f32.gmra.mxu0 %v512
        %v570 = vpop.f32.mrf.mxu0
        %v571 = vadd.f32 %v546, %v570
        %572 = vmatmul.f32.gmra.mxu0 %v513
        %v573 = vpop.f32.mrf.mxu0
        %v574 = vadd.f32 %v546, %v573
        %575 = vmatmul.f32.gmra.mxu0 %v514
        %v576 = vpop.f32.mrf.mxu0
        %v577 = vadd.f32 %v546, %v576
        %578 = vmatmul.f32.gmra.mxu0 %v515
        %v579 = vpop.f32.mrf.mxu0
        %v580 = vadd.f32 %v546, %v579
        %581 = vmatmul.f32.gmra.mxu0 %v516
        %v582 = vpop.f32.mrf.mxu0
        %v583 = vadd.f32 %v546, %v582
        %584 = vmatmul.f32.gmra.mxu0 %v517
        %v585 = vpop.f32.mrf.mxu0
        %v586 = vadd.f32 %v546, %v585
        %587 = vmatmul.f32.gmra.mxu0 %v518
        %v588 = vpop.f32.mrf.mxu0
        %v589 = vadd.f32 %v546, %v588
        %590 = vmatmul.f32.gmra.mxu0 %v519
        %v591 = vpop.f32.mrf.mxu0
        %v592 = vadd.f32 %v546, %v591
        %593 = vmatmul.f32.gmra.mxu0 %v520
        %v594 = vpop.f32.mrf.mxu0
        %v595 = vadd.f32 %v546, %v594
        %596 = vmatmul.f32.gmra.mxu0 %v521
        %v597 = vpop.f32.mrf.mxu0
        %v598 = vadd.f32 %v546, %v597
        %599 = vmatmul.f32.gmra.mxu0 %v522
        %v600 = vpop.f32.mrf.mxu0
        %v601 = vadd.f32 %v546, %v600
        %602 = vmatmul.f32.gmra.mxu0 %v523
        %v603 = vpop.f32.mrf.mxu0
        %v604 = vadd.f32 %v546, %v603
        %605 = vmatmul.f32.gmra.mxu0 %v524
        %v606 = vpop.f32.mrf.mxu0
        %v607 = vadd.f32 %v546, %v606
        %608 = vmatmul.f32.gmra.mxu0 %v525
        %v609 = vpop.f32.mrf.mxu0
        %v610 = vadd.f32 %v546, %v609
        %611 = vmatmul.f32.gmra.mxu0 %v526
        %v612 = vpop.f32.mrf.mxu0
        %v613 = vadd.f32 %v546, %v612
        %614 = vmatmul.f32.gmra.mxu0 %v527
        %v615 = vpop.f32.mrf.mxu0
        %v616 = vadd.f32 %v546, %v615
        %617 = vmatmul.f32.gmra.mxu0 %v528
        %v618 = vpop.f32.mrf.mxu0
        %v619 = vadd.f32 %v546, %v618
        %620 = vdwg.mxu0
        %v621 = vmax.f32 %v565, 0.0
        %v622 = vmax.f32 %v568, 0.0
        %v623 = vmax.f32 %v571, 0.0
        %v624 = vmax.f32 %v574, 0.0
        %v625 = vmax.f32 %v577, 0.0
        %v626 = vmax.f32 %v580, 0.0
        %v627 = vmax.f32 %v583, 0.0
        %v628 = vmax.f32 %v586, 0.0
        %v629 = vmax.f32 %v589, 0.0
        %v630 = vmax.f32 %v592, 0.0
        %v631 = vmax.f32 %v595, 0.0
        %v632 = vmax.f32 %v598, 0.0
        %v633 = vmax.f32 %v601, 0.0
        %v634 = vmax.f32 %v604, 0.0
        %v635 = vmax.f32 %v607, 0.0
        %v636 = vmax.f32 %v610, 0.0
        %v637 = vmax.f32 %v613, 0.0
        %v638 = vmax.f32 %v616, 0.0
        %v639 = vmax.f32 %v619, 0.0
        %v640 = vld [vmem:[%s3] sm:$0xff]
        %v641 = vld [vmem:[%s3 + $0x8] sm:$0xff]
        %v642 = vld [vmem:[%s3 + $0x10] sm:$0xff]
        %v643 = vld [vmem:[%s3 + $0x18] sm:$0xff]
        %v644 = vld [vmem:[%s3 + $0x20] sm:$0xff]
        %v645 = vld [vmem:[%s3 + $0x28] sm:$0xff]
        %v646 = vld [vmem:[%s3 + $0x30] sm:$0xff]
        %v647 = vld [vmem:[%s3 + $0x38] sm:$0xff]
        %v648 = vld [vmem:[%s3 + $0x40] sm:$0xff]
        %v649 = vld [vmem:[%s3 + $0x48] sm:$0xff]
        %v650 = vld [vmem:[%s3 + $0x50] sm:$0xff]
        %v651 = vld [vmem:[%s3 + $0x58] sm:$0xff]
        %v652 = vld [vmem:[%s3 + $0x60] sm:$0xff]
        %v653 = vld [vmem:[%s3 + $0x68] sm:$0xff]
        %v654 = vld [vmem:[%s3 + $0x70] sm:$0xff]
        %v655 = vld [vmem:[%s3 + $0x78] sm:$0xff]
        %v656 = vld [vmem:[%s5] sm:$0x1]
        %v657 = vperm.slane %v656, 0
        %658 = vmatpush.msra.mxu0 %v655
        %659 = vmatpush.msra.mxu0 %v654
        %660 = vmatpush.msra.mxu0 %v653
        %661 = vmatpush.msra.mxu0 %v652
        %662 = vmatpush.msra.mxu0 %v651
        %663 = vmatpush.msra.mxu0 %v650
        %664 = vmatpush.msra.mxu0 %v649
        %665 = vmatpush.msra.mxu0 %v648
        %666 = vmatpush.msra.mxu0 %v647
        %667 = vmatpush.msra.mxu0 %v646
        %668 = vmatpush.msra.mxu0 %v645
        %669 = vmatpush.msra.mxu0 %v644
        %670 = vmatpush.msra.mxu0 %v643
        %671 = vmatpush.msra.mxu0 %v642
        %672 = vmatpush.msra.mxu0 %v641
        %673 = vmatpush.msra.mxu0 %v640
        %674 = vmatmul.f32.gmra.mxu0 %v621
        %v675 = vpop.f32.mrf.mxu0
        %v676 = vadd.f32 %v657, %v675
        %677 = vmatmul.f32.gmra.mxu0 %v622
        %v678 = vpop.f32.mrf.mxu0
        %v679 = vadd.f32 %v657, %v678
        %680 = vmatmul.f32.gmra.mxu0 %v623
        %v681 = vpop.f32.mrf.mxu0
        %v682 = vadd.f32 %v657, %v681
        %683 = vmatmul.f32.gmra.mxu0 %v624
        %v684 = vpop.f32.mrf.mxu0
        %v685 = vadd.f32 %v657, %v684
        %686 = vmatmul.f32.gmra.mxu0 %v625
        %v687 = vpop.f32.mrf.mxu0
        %v688 = vadd.f32 %v657, %v687
        %689 = vmatmul.f32.gmra.mxu0 %v626
        %v690 = vpop.f32.mrf.mxu0
        %v691 = vadd.f32 %v657, %v690
        %692 = vmatmul.f32.gmra.mxu0 %v627
        %v693 = vpop.f32.mrf.mxu0
        %v694 = vadd.f32 %v657, %v693
        %695 = vmatmul.f32.gmra.mxu0 %v628
        %v696 = vpop.f32.mrf.mxu0
        %v697 = vadd.f32 %v657, %v696
        %698 = vmatmul.f32.gmra.mxu0 %v629
        %v699 = vpop.f32.mrf.mxu0
        %v700 = vadd.f32 %v657, %v699
        %701 = vmatmul.f32.gmra.mxu0 %v630
        %v702 = vpop.f32.mrf.mxu0
        %v703 = vadd.f32 %v657, %v702
        %704 = vmatmul.f32.gmra.mxu0 %v631
        %v705 = vpop.f32.mrf.mxu0
        %v706 = vadd.f32 %v657, %v705
        %707 = vmatmul.f32.gmra.mxu0 %v632
        %v708 = vpop.f32.mrf.mxu0
        %v709 = vadd.f32 %v657, %v708
        %710 = vmatmul.f32.gmra.mxu0 %v633
        %v711 = vpop.f32.mrf.mxu0
        %v712 = vadd.f32 %v657, %v711
        %713 = vmatmul.f32.gmra.mxu0 %v634
        %v714 = vpop.f32.mrf.mxu0
        %v715 = vadd.f32 %v657, %v714
        %716 = vmatmul.f32.gmra.mxu0 %v635
        %v717 = vpop.f32.mrf.mxu0
        %v718 = vadd.f32 %v657, %v717
        %719 = vmatmul.f32.gmra.mxu0 %v636
        %v720 = vpop.f32.mrf.mxu0
        %v721 = vadd.f32 %v657, %v720
        %722 = vmatmul.f32.gmra.mxu0 %v637
        %v723 = vpop.f32.mrf.mxu0
        %v724 = vadd.f32 %v657, %v723
        %725 = vmatmul.f32.gmra.mxu0 %v638
        %v726 = vpop.f32.mrf.mxu0
        %v727 = vadd.f32 %v657, %v726
        %728 = vmatmul.f32.gmra.mxu0 %v639
        %v729 = vpop.f32.mrf.mxu0
        %v730 = vadd.f32 %v657, %v729
        %731 = vdwg.mxu0
        %v732 = vld [vmem:[%s6] sm:$0x1]
        %v733 = vld [vmem:[%s6 + $0x1] sm:$0x1]
        %vm734 = vcmp.gt.f32.partialorder %v339, 0.0
        %vm735 = vcmp.gt.f32.partialorder %v340, 0.0
        %vm736 = vcmp.gt.f32.partialorder %v341, 0.0
        %vm737 = vcmp.gt.f32.partialorder %v342, 0.0
        %vm738 = vcmp.gt.f32.partialorder %v343, 0.0
        %vm739 = vcmp.gt.f32.partialorder %v344, 0.0
        %vm740 = vcmp.gt.f32.partialorder %v345, 0.0
        %vm741 = vcmp.gt.f32.partialorder %v346, 0.0
        %vm742 = vcmp.gt.f32.partialorder %v347, 0.0
        %vm743 = vcmp.gt.f32.partialorder %v348, 0.0
        %vm744 = vcmp.gt.f32.partialorder %v349, 0.0
        %vm745 = vcmp.gt.f32.partialorder %v350, 0.0
        %vm746 = vcmp.gt.f32.partialorder %v351, 0.0
        %vm747 = vcmp.gt.f32.partialorder %v352, 0.0
        %vm748 = vcmp.gt.f32.partialorder %v353, 0.0
        %vm749 = vcmp.gt.f32.partialorder %v354, 0.0
        %vm750 = vcmp.gt.f32.partialorder %v355, 0.0
        %vm751 = vcmp.gt.f32.partialorder %v356, 0.0
        %vm752 = vcmp.gt.f32.partialorder %v357, 0.0
        %v753 = vsel %vm734, 1, 0
        %v754 = vsel %vm735, 1, 0
        %v755 = vsel %vm736, 1, 0
        %v756 = vsel %vm737, 1, 0
        %v757 = vsel %vm738, 1, 0
        %v758 = vsel %vm739, 1, 0
        %v759 = vsel %vm740, 1, 0
        %v760 = vsel %vm741, 1, 0
        %v761 = vsel %vm742, 1, 0
        %v762 = vsel %vm743, 1, 0
        %v763 = vsel %vm744, 1, 0
        %v764 = vsel %vm745, 1, 0
        %v765 = vsel %vm746, 1, 0
        %v766 = vsel %vm747, 1, 0
        %v767 = vsel %vm748, 1, 0
        %v768 = vsel %vm749, 1, 0
        %v769 = vsel %vm750, 1, 0
        %v770 = vsel %vm751, 1, 0
        %v771 = vsel %vm752, 1, 0
        %v772 = vcvt.s32.f32 %v753
        %v773 = vcvt.s32.f32 %v754
        %v774 = vcvt.s32.f32 %v755
        %v775 = vcvt.s32.f32 %v756
        %v776 = vcvt.s32.f32 %v757
        %v777 = vcvt.s32.f32 %v758
        %v778 = vcvt.s32.f32 %v759
        %v779 = vcvt.s32.f32 %v760
        %v780 = vcvt.s32.f32 %v761
        %v781 = vcvt.s32.f32 %v762
        %v782 = vcvt.s32.f32 %v763
        %v783 = vcvt.s32.f32 %v764
        %v784 = vcvt.s32.f32 %v765
        %v785 = vcvt.s32.f32 %v766
        %v786 = vcvt.s32.f32 %v767
        %v787 = vcvt.s32.f32 %v768
        %v788 = vcvt.s32.f32 %v769
        %v789 = vcvt.s32.f32 %v770
        %v790 = vcvt.s32.f32 %v771
        %v791 = vperm.slane %v732, 0
        %v792 = vmul.f32 %v339, %v791
        %v793 = vmul.f32 %v340, %v791
        %v794 = vmul.f32 %v341, %v791
        %v795 = vmul.f32 %v342, %v791
        %v796 = vmul.f32 %v343, %v791
        %v797 = vmul.f32 %v344, %v791
        %v798 = vmul.f32 %v345, %v791
        %v799 = vmul.f32 %v346, %v791
        %v800 = vmul.f32 %v347, %v791
        %v801 = vmul.f32 %v348, %v791
        %v802 = vmul.f32 %v349, %v791
        %v803 = vmul.f32 %v350, %v791
        %v804 = vmul.f32 %v351, %v791
        %v805 = vmul.f32 %v352, %v791
        %v806 = vmul.f32 %v353, %v791
        %v807 = vmul.f32 %v354, %v791
        %v808 = vmul.f32 %v355, %v791
        %v809 = vmul.f32 %v356, %v791
        %v810 = vmul.f32 %v357, %v791
        %v811 = vsel %vm374, %v792, 0.0
        %812 = vadd.xlane.f32.xlu0 %v811
        %v813 = vpop.xlane.xlu0 %812
        %v814 = vsel %vm374, %v793, 0.0
        %815 = vadd.xlane.f32.xlu0 %v814
        %v816 = vpop.xlane.xlu0 %815
        %v817 = vsel %vm374, %v794, 0.0
        %818 = vadd.xlane.f32.xlu0 %v817
        %v819 = vpop.xlane.xlu0 %818
        %v820 = vsel %vm374, %v795, 0.0
        %821 = vadd.xlane.f32.xlu0 %v820
        %v822 = vpop.xlane.xlu0 %821
        %v823 = vsel %vm374, %v796, 0.0
        %824 = vadd.xlane.f32.xlu0 %v823
        %v825 = vpop.xlane.xlu0 %824
        %v826 = vsel %vm374, %v797, 0.0
        %827 = vadd.xlane.f32.xlu0 %v826
        %v828 = vpop.xlane.xlu0 %827
        %v829 = vsel %vm374, %v798, 0.0
        %830 = vadd.xlane.f32.xlu0 %v829
        %v831 = vpop.xlane.xlu0 %830
        %v832 = vsel %vm374, %v799, 0.0
        %833 = vadd.xlane.f32.xlu0 %v832
        %v834 = vpop.xlane.xlu0 %833
        %v835 = vsel %vm374, %v800, 0.0
        %836 = vadd.xlane.f32.xlu0 %v835
        %v837 = vpop.xlane.xlu0 %836
        %v838 = vsel %vm374, %v801, 0.0
        %839 = vadd.xlane.f32.xlu0 %v838
        %v840 = vpop.xlane.xlu0 %839
        %v841 = vsel %vm374, %v802, 0.0
        %842 = vadd.xlane.f32.xlu0 %v841
        %v843 = vpop.xlane.xlu0 %842
        %v844 = vsel %vm374, %v803, 0.0
        %845 = vadd.xlane.f32.xlu0 %v844
        %v846 = vpop.xlane.xlu0 %845
        %v847 = vsel %vm374, %v804, 0.0
        %848 = vadd.xlane.f32.xlu0 %v847
        %v849 = vpop.xlane.xlu0 %848
        %v850 = vsel %vm374, %v805, 0.0
        %851 = vadd.xlane.f32.xlu0 %v850
        %v852 = vpop.xlane.xlu0 %851
        %v853 = vsel %vm374, %v806, 0.0
        %854 = vadd.xlane.f32.xlu0 %v853
        %v855 = vpop.xlane.xlu0 %854
        %v856 = vsel %vm374, %v807, 0.0
        %857 = vadd.xlane.f32.xlu0 %v856
        %v858 = vpop.xlane.xlu0 %857
        %v859 = vsel %vm374, %v808, 0.0
        %860 = vadd.xlane.f32.xlu0 %v859
        %v861 = vpop.xlane.xlu0 %860
        %v862 = vsel %vm374, %v809, 0.0
        %863 = vadd.xlane.f32.xlu0 %v862
        %v864 = vpop.xlane.xlu0 %863
        %v865 = vsel %vm374, %v810, 0.0
        %866 = vadd.xlane.f32.xlu0 %v865
        %v867 = vpop.xlane.xlu0 %866
        %v868 = vperm.slane %v733, 0
        %v869 = vmul.f32 %v772, %v868
        %v870 = vmul.f32 %v773, %v868
        %v871 = vmul.f32 %v774, %v868
        %v872 = vmul.f32 %v775, %v868
        %v873 = vmul.f32 %v776, %v868
        %v874 = vmul.f32 %v777, %v868
        %v875 = vmul.f32 %v778, %v868
        %v876 = vmul.f32 %v779, %v868
        %v877 = vmul.f32 %v780, %v868
        %v878 = vmul.f32 %v781, %v868
        %v879 = vmul.f32 %v782, %v868
        %v880 = vmul.f32 %v783, %v868
        %v881 = vmul.f32 %v784, %v868
        %v882 = vmul.f32 %v785, %v868
        %v883 = vmul.f32 %v786, %v868
        %v884 = vmul.f32 %v787, %v868
        %v885 = vmul.f32 %v788, %v868
        %v886 = vmul.f32 %v789, %v868
        %v887 = vmul.f32 %v790, %v868
        %v888 = vsel %vm374, %v869, 0.0
        %889 = vadd.xlane.f32.xlu0 %v888
        %v890 = vpop.xlane.xlu0 %889
        %v891 = vsel %vm374, %v870, 0.0
        %892 = vadd.xlane.f32.xlu0 %v891
        %v893 = vpop.xlane.xlu0 %892
        %v894 = vsel %vm374, %v871, 0.0
        %895 = vadd.xlane.f32.xlu0 %v894
        %v896 = vpop.xlane.xlu0 %895
        %v897 = vsel %vm374, %v872, 0.0
        %898 = vadd.xlane.f32.xlu0 %v897
        %v899 = vpop.xlane.xlu0 %898
        %v900 = vsel %vm374, %v873, 0.0
        %901 = vadd.xlane.f32.xlu0 %v900
        %v902 = vpop.xlane.xlu0 %901
        %v903 = vsel %vm374, %v874, 0.0
        %904 = vadd.xlane.f32.xlu0 %v903
        %v905 = vpop.xlane.xlu0 %904
        %v906 = vsel %vm374, %v875, 0.0
        %907 = vadd.xlane.f32.xlu0 %v906
        %v908 = vpop.xlane.xlu0 %907
        %v909 = vsel %vm374, %v876, 0.0
        %910 = vadd.xlane.f32.xlu0 %v909
        %v911 = vpop.xlane.xlu0 %910
        %v912 = vsel %vm374, %v877, 0.0
        %913 = vadd.xlane.f32.xlu0 %v912
        %v914 = vpop.xlane.xlu0 %913
        %v915 = vsel %vm374, %v878, 0.0
        %916 = vadd.xlane.f32.xlu0 %v915
        %v917 = vpop.xlane.xlu0 %916
        %v918 = vsel %vm374, %v879, 0.0
        %919 = vadd.xlane.f32.xlu0 %v918
        %v920 = vpop.xlane.xlu0 %919
        %v921 = vsel %vm374, %v880, 0.0
        %922 = vadd.xlane.f32.xlu0 %v921
        %v923 = vpop.xlane.xlu0 %922
        %v924 = vsel %vm374, %v881, 0.0
        %925 = vadd.xlane.f32.xlu0 %v924
        %v926 = vpop.xlane.xlu0 %925
        %v927 = vsel %vm374, %v882, 0.0
        %928 = vadd.xlane.f32.xlu0 %v927
        %v929 = vpop.xlane.xlu0 %928
        %v930 = vsel %vm374, %v883, 0.0
        %931 = vadd.xlane.f32.xlu0 %v930
        %v932 = vpop.xlane.xlu0 %931
        %v933 = vsel %vm374, %v884, 0.0
        %934 = vadd.xlane.f32.xlu0 %v933
        %v935 = vpop.xlane.xlu0 %934
        %v936 = vsel %vm374, %v885, 0.0
        %937 = vadd.xlane.f32.xlu0 %v936
        %v938 = vpop.xlane.xlu0 %937
        %v939 = vsel %vm374, %v886, 0.0
        %940 = vadd.xlane.f32.xlu0 %v939
        %v941 = vpop.xlane.xlu0 %940
        %v942 = vsel %vm374, %v887, 0.0
        %943 = vadd.xlane.f32.xlu0 %v942
        %v944 = vpop.xlane.xlu0 %943
        %vm945 = vcmp.le.f32.partialorder %v813, 2.0
        %vm946 = vcmp.le.f32.partialorder %v816, 2.0
        %vm947 = vcmp.le.f32.partialorder %v819, 2.0
        %vm948 = vcmp.le.f32.partialorder %v822, 2.0
        %vm949 = vcmp.le.f32.partialorder %v825, 2.0
        %vm950 = vcmp.le.f32.partialorder %v828, 2.0
        %vm951 = vcmp.le.f32.partialorder %v831, 2.0
        %vm952 = vcmp.le.f32.partialorder %v834, 2.0
        %vm953 = vcmp.le.f32.partialorder %v837, 2.0
        %vm954 = vcmp.le.f32.partialorder %v840, 2.0
        %vm955 = vcmp.le.f32.partialorder %v843, 2.0
        %vm956 = vcmp.le.f32.partialorder %v846, 2.0
        %vm957 = vcmp.le.f32.partialorder %v849, 2.0
        %vm958 = vcmp.le.f32.partialorder %v852, 2.0
        %vm959 = vcmp.le.f32.partialorder %v855, 2.0
        %vm960 = vcmp.le.f32.partialorder %v858, 2.0
        %vm961 = vcmp.le.f32.partialorder %v861, 2.0
        %vm962 = vcmp.le.f32.partialorder %v864, 2.0
        %vm963 = vcmp.le.f32.partialorder %v867, 2.0
        %vm964 = vcmp.eq.f32.partialorder %v890, 2.0
        %vm965 = vcmp.eq.f32.partialorder %v893, 2.0
        %vm966 = vcmp.eq.f32.partialorder %v896, 2.0
        %vm967 = vcmp.eq.f32.partialorder %v899, 2.0
        %vm968 = vcmp.eq.f32.partialorder %v902, 2.0
        %vm969 = vcmp.eq.f32.partialorder %v905, 2.0
        %vm970 = vcmp.eq.f32.partialorder %v908, 2.0
        %vm971 = vcmp.eq.f32.partialorder %v911, 2.0
        %vm972 = vcmp.eq.f32.partialorder %v914, 2.0
        %vm973 = vcmp.eq.f32.partialorder %v917, 2.0
        %vm974 = vcmp.eq.f32.partialorder %v920, 2.0
        %vm975 = vcmp.eq.f32.partialorder %v923, 2.0
        %vm976 = vcmp.eq.f32.partialorder %v926, 2.0
        %vm977 = vcmp.eq.f32.partialorder %v929, 2.0
        %vm978 = vcmp.eq.f32.partialorder %v932, 2.0
        %vm979 = vcmp.eq.f32.partialorder %v935, 2.0
        %vm980 = vcmp.eq.f32.partialorder %v938, 2.0
        %vm981 = vcmp.eq.f32.partialorder %v941, 2.0
        %vm982 = vcmp.eq.f32.partialorder %v944, 2.0
        %v983 = vld [vmem:[%s5 + $0x1] sm:$0x1]
        %vm984 = vcmp.gt.f32.partialorder %v983, 0.0
        %v985 = vld [vmem:[%s5 + $0x2] sm:$0x1]
        %vm986 = vcmp.gt.f32.partialorder %v985, 0.0
        %vm987 = vmxor %vm945, 1
        %vm988 = vmxor %vm946, 1
        %vm989 = vmxor %vm947, 1
        %vm990 = vmxor %vm948, 1
        %vm991 = vmxor %vm949, 1
        %vm992 = vmxor %vm950, 1
        %vm993 = vmxor %vm951, 1
        %vm994 = vmxor %vm952, 1
        %vm995 = vmxor %vm953, 1
        %vm996 = vmxor %vm954, 1
        %vm997 = vmxor %vm955, 1
        %vm998 = vmxor %vm956, 1
        %vm999 = vmxor %vm957, 1
        %vm1000 = vmxor %vm958, 1
        %vm1001 = vmxor %vm959, 1
        %vm1002 = vmxor %vm960, 1
        %vm1003 = vmxor %vm961, 1
        %vm1004 = vmxor %vm962, 1
        %vm1005 = vmxor %vm963, 1
        %v1006 = vsel %vm984, 1, 0
        %v1007 = vperm.slane %v1006, 0
        %vm1008 = vcmp.eq.s32.totalorder %v1007, 1
        %v1009 = vsel %vm987, 1, 0
        %v1010 = vsel %vm988, 1, 0
        %v1011 = vsel %vm989, 1, 0
        %v1012 = vsel %vm990, 1, 0
        %v1013 = vsel %vm991, 1, 0
        %v1014 = vsel %vm992, 1, 0
        %v1015 = vsel %vm993, 1, 0
        %v1016 = vsel %vm994, 1, 0
        %v1017 = vsel %vm995, 1, 0
        %v1018 = vsel %vm996, 1, 0
        %v1019 = vsel %vm997, 1, 0
        %v1020 = vsel %vm998, 1, 0
        %v1021 = vsel %vm999, 1, 0
        %v1022 = vsel %vm1000, 1, 0
        %v1023 = vsel %vm1001, 1, 0
        %v1024 = vsel %vm1002, 1, 0
        %v1025 = vsel %vm1003, 1, 0
        %v1026 = vsel %vm1004, 1, 0
        %v1027 = vsel %vm1005, 1, 0
        %vm1028 = vcmp.eq.s32.totalorder %v1009, 1
        %vm1029 = vcmp.eq.s32.totalorder %v1010, 1
        %vm1030 = vcmp.eq.s32.totalorder %v1011, 1
        %vm1031 = vcmp.eq.s32.totalorder %v1012, 1
        %vm1032 = vcmp.eq.s32.totalorder %v1013, 1
        %vm1033 = vcmp.eq.s32.totalorder %v1014, 1
        %vm1034 = vcmp.eq.s32.totalorder %v1015, 1
        %vm1035 = vcmp.eq.s32.totalorder %v1016, 1
        %vm1036 = vcmp.eq.s32.totalorder %v1017, 1
        %vm1037 = vcmp.eq.s32.totalorder %v1018, 1
        %vm1038 = vcmp.eq.s32.totalorder %v1019, 1
        %vm1039 = vcmp.eq.s32.totalorder %v1020, 1
        %vm1040 = vcmp.eq.s32.totalorder %v1021, 1
        %vm1041 = vcmp.eq.s32.totalorder %v1022, 1
        %vm1042 = vcmp.eq.s32.totalorder %v1023, 1
        %vm1043 = vcmp.eq.s32.totalorder %v1024, 1
        %vm1044 = vcmp.eq.s32.totalorder %v1025, 1
        %vm1045 = vcmp.eq.s32.totalorder %v1026, 1
        %vm1046 = vcmp.eq.s32.totalorder %v1027, 1
        %vm1047 = vmand %vm1008, %vm1028
        %vm1048 = vmand %vm1008, %vm1029
        %vm1049 = vmand %vm1008, %vm1030
        %vm1050 = vmand %vm1008, %vm1031
        %vm1051 = vmand %vm1008, %vm1032
        %vm1052 = vmand %vm1008, %vm1033
        %vm1053 = vmand %vm1008, %vm1034
        %vm1054 = vmand %vm1008, %vm1035
        %vm1055 = vmand %vm1008, %vm1036
        %vm1056 = vmand %vm1008, %vm1037
        %vm1057 = vmand %vm1008, %vm1038
        %vm1058 = vmand %vm1008, %vm1039
        %vm1059 = vmand %vm1008, %vm1040
        %vm1060 = vmand %vm1008, %vm1041
        %vm1061 = vmand %vm1008, %vm1042
        %vm1062 = vmand %vm1008, %vm1043
        %vm1063 = vmand %vm1008, %vm1044
        %vm1064 = vmand %vm1008, %vm1045
        %vm1065 = vmand %vm1008, %vm1046
        %v1066 = vsel %vm1047, -inf, %v676
        %v1067 = vsel %vm1048, -inf, %v679
        %v1068 = vsel %vm1049, -inf, %v682
        %v1069 = vsel %vm1050, -inf, %v685
        %v1070 = vsel %vm1051, -inf, %v688
        %v1071 = vsel %vm1052, -inf, %v691
        %v1072 = vsel %vm1053, -inf, %v694
        %v1073 = vsel %vm1054, -inf, %v697
        %v1074 = vsel %vm1055, -inf, %v700
        %v1075 = vsel %vm1056, -inf, %v703
        %v1076 = vsel %vm1057, -inf, %v706
        %v1077 = vsel %vm1058, -inf, %v709
        %v1078 = vsel %vm1059, -inf, %v712
        %v1079 = vsel %vm1060, -inf, %v715
        %v1080 = vsel %vm1061, -inf, %v718
        %v1081 = vsel %vm1062, -inf, %v721
        %v1082 = vsel %vm1063, -inf, %v724
        %v1083 = vsel %vm1064, -inf, %v727
        %v1084 = vsel %vm1065, -inf, %v730
        %vm1085 = vmxor %vm964, 1
        %vm1086 = vmxor %vm965, 1
        %vm1087 = vmxor %vm966, 1
        %vm1088 = vmxor %vm967, 1
        %vm1089 = vmxor %vm968, 1
        %vm1090 = vmxor %vm969, 1
        %vm1091 = vmxor %vm970, 1
        %vm1092 = vmxor %vm971, 1
        %vm1093 = vmxor %vm972, 1
        %vm1094 = vmxor %vm973, 1
        %vm1095 = vmxor %vm974, 1
        %vm1096 = vmxor %vm975, 1
        %vm1097 = vmxor %vm976, 1
        %vm1098 = vmxor %vm977, 1
        %vm1099 = vmxor %vm978, 1
        %vm1100 = vmxor %vm979, 1
        %vm1101 = vmxor %vm980, 1
        %vm1102 = vmxor %vm981, 1
        %vm1103 = vmxor %vm982, 1
        %v1104 = vsel %vm986, 1, 0
        %v1105 = vperm.slane %v1104, 0
        %vm1106 = vcmp.eq.s32.totalorder %v1105, 1
        %v1107 = vsel %vm1085, 1, 0
        %v1108 = vsel %vm1086, 1, 0
        %v1109 = vsel %vm1087, 1, 0
        %v1110 = vsel %vm1088, 1, 0
        %v1111 = vsel %vm1089, 1, 0
        %v1112 = vsel %vm1090, 1, 0
        %v1113 = vsel %vm1091, 1, 0
        %v1114 = vsel %vm1092, 1, 0
        %v1115 = vsel %vm1093, 1, 0
        %v1116 = vsel %vm1094, 1, 0
        %v1117 = vsel %vm1095, 1, 0
        %v1118 = vsel %vm1096, 1, 0
        %v1119 = vsel %vm1097, 1, 0
        %v1120 = vsel %vm1098, 1, 0
        %v1121 = vsel %vm1099, 1, 0
        %v1122 = vsel %vm1100, 1, 0
        %v1123 = vsel %vm1101, 1, 0
        %v1124 = vsel %vm1102, 1, 0
        %v1125 = vsel %vm1103, 1, 0
        %vm1126 = vcmp.eq.s32.totalorder %v1107, 1
        %vm1127 = vcmp.eq.s32.totalorder %v1108, 1
        %vm1128 = vcmp.eq.s32.totalorder %v1109, 1
        %vm1129 = vcmp.eq.s32.totalorder %v1110, 1
        %vm1130 = vcmp.eq.s32.totalorder %v1111, 1
        %vm1131 = vcmp.eq.s32.totalorder %v1112, 1
        %vm1132 = vcmp.eq.s32.totalorder %v1113, 1
        %vm1133 = vcmp.eq.s32.totalorder %v1114, 1
        %vm1134 = vcmp.eq.s32.totalorder %v1115, 1
        %vm1135 = vcmp.eq.s32.totalorder %v1116, 1
        %vm1136 = vcmp.eq.s32.totalorder %v1117, 1
        %vm1137 = vcmp.eq.s32.totalorder %v1118, 1
        %vm1138 = vcmp.eq.s32.totalorder %v1119, 1
        %vm1139 = vcmp.eq.s32.totalorder %v1120, 1
        %vm1140 = vcmp.eq.s32.totalorder %v1121, 1
        %vm1141 = vcmp.eq.s32.totalorder %v1122, 1
        %vm1142 = vcmp.eq.s32.totalorder %v1123, 1
        %vm1143 = vcmp.eq.s32.totalorder %v1124, 1
        %vm1144 = vcmp.eq.s32.totalorder %v1125, 1
        %vm1145 = vmand %vm1106, %vm1126
        %vm1146 = vmand %vm1106, %vm1127
        %vm1147 = vmand %vm1106, %vm1128
        %vm1148 = vmand %vm1106, %vm1129
        %vm1149 = vmand %vm1106, %vm1130
        %vm1150 = vmand %vm1106, %vm1131
        %vm1151 = vmand %vm1106, %vm1132
        %vm1152 = vmand %vm1106, %vm1133
        %vm1153 = vmand %vm1106, %vm1134
        %vm1154 = vmand %vm1106, %vm1135
        %vm1155 = vmand %vm1106, %vm1136
        %vm1156 = vmand %vm1106, %vm1137
        %vm1157 = vmand %vm1106, %vm1138
        %vm1158 = vmand %vm1106, %vm1139
        %vm1159 = vmand %vm1106, %vm1140
        %vm1160 = vmand %vm1106, %vm1141
        %vm1161 = vmand %vm1106, %vm1142
        %vm1162 = vmand %vm1106, %vm1143
        %vm1163 = vmand %vm1106, %vm1144
        %v1164 = vsel %vm1145, -inf, %v1066
        %v1165 = vsel %vm1146, -inf, %v1067
        %v1166 = vsel %vm1147, -inf, %v1068
        %v1167 = vsel %vm1148, -inf, %v1069
        %v1168 = vsel %vm1149, -inf, %v1070
        %v1169 = vsel %vm1150, -inf, %v1071
        %v1170 = vsel %vm1151, -inf, %v1072
        %v1171 = vsel %vm1152, -inf, %v1073
        %v1172 = vsel %vm1153, -inf, %v1074
        %v1173 = vsel %vm1154, -inf, %v1075
        %v1174 = vsel %vm1155, -inf, %v1076
        %v1175 = vsel %vm1156, -inf, %v1077
        %v1176 = vsel %vm1157, -inf, %v1078
        %v1177 = vsel %vm1158, -inf, %v1079
        %v1178 = vsel %vm1159, -inf, %v1080
        %v1179 = vsel %vm1160, -inf, %v1081
        %v1180 = vsel %vm1161, -inf, %v1082
        %v1181 = vsel %vm1162, -inf, %v1083
        %v1182 = vsel %vm1163, -inf, %v1084
        %vm1183 = vcmask 64512
        %1184 = vst.msk [vmem:[%s318] sm:$0xff] %vm1183, %v1164
        %1185 = vst.msk [vmem:[%s318 + $0x8] sm:$0xff] %vm1183, %v1165
        %1186 = vst.msk [vmem:[%s318 + $0x10] sm:$0xff] %vm1183, %v1166
        %1187 = vst.msk [vmem:[%s318 + $0x18] sm:$0xff] %vm1183, %v1167
        %1188 = vst.msk [vmem:[%s318 + $0x20] sm:$0xff] %vm1183, %v1168
        %1189 = vst.msk [vmem:[%s318 + $0x28] sm:$0xff] %vm1183, %v1169
        %1190 = vst.msk [vmem:[%s318 + $0x30] sm:$0xff] %vm1183, %v1170
        %1191 = vst.msk [vmem:[%s318 + $0x38] sm:$0xff] %vm1183, %v1171
        %1192 = vst.msk [vmem:[%s318 + $0x40] sm:$0xff] %vm1183, %v1172
        %1193 = vst.msk [vmem:[%s318 + $0x48] sm:$0xff] %vm1183, %v1173
        %1194 = vst.msk [vmem:[%s318 + $0x50] sm:$0xff] %vm1183, %v1174
        %1195 = vst.msk [vmem:[%s318 + $0x58] sm:$0xff] %vm1183, %v1175
        %1196 = vst.msk [vmem:[%s318 + $0x60] sm:$0xff] %vm1183, %v1176
        %1197 = vst.msk [vmem:[%s318 + $0x68] sm:$0xff] %vm1183, %v1177
        %1198 = vst.msk [vmem:[%s318 + $0x70] sm:$0xff] %vm1183, %v1178
        %1199 = vst.msk [vmem:[%s318 + $0x78] sm:$0xff] %vm1183, %v1179
        %1200 = vst.msk [vmem:[%s318 + $0x80] sm:$0xff] %vm1183, %v1180
        %1201 = vst.msk [vmem:[%s318 + $0x88] sm:$0xff] %vm1183, %v1181
        %1202 = vst.msk [vmem:[%s318 + $0x90] sm:$0xff] %vm1183, %v1182
        %s1203 = smul.u32 19, %s22
        %p1204 = scmp.lt.s32.totalorder %s1203, 37
        %s1205 = scalar_select %p1204, %s1203, 37
        %s1206 = smul.addr %s1205, 8
        %s1207 = scalar_lea.vmem %s7, %s1206
        // Predicated region
        $region57: #{tpu_custom_call.1} parent=47 // pred_check
          %p1208 = pneg %p192
        $region58: #{tpu_custom_call.1} parent=47 // pred_check_branch
          %1210 = sbr.rel (%p1208) target = $region60
        $region59: #{tpu_custom_call.1} parent=47 // pred_region
          %s1211 = smul.u32 19, %s22
        $region60: #{tpu_custom_call.1} parent=47 // pred_fallthru
          _
      $region48: #{tpu_custom_call.1} parent=5 // pred_fallthru
        _
      %p1212 = scmp.le.s32.totalorder 2, %s17
      // Predicated region
      $region61: #{tpu_custom_call.1} parent=5 // pred_check
        %p1213 = pneg %p1212
      $region62: #{tpu_custom_call.1} parent=5 // pred_check_branch
        %1215 = sbr.rel (%p1213) target = $region64
      $region63: #{tpu_custom_call.1} parent=5 // pred_region
        %s1216 = ssub.s32 %s17, 2
        // Predicated region
        $region65: #{tpu_custom_call.1} parent=63 // pred_check
          %p1217 = pneg %p198
        $region66: #{tpu_custom_call.1} parent=63 // pred_check_branch
          %1219 = sbr.rel (%p1217) target = $region68
        $region67: #{tpu_custom_call.1} parent=63 // pred_region
          %s1220 = smul.u32 19, %s23
          %p1221 = scmp.lt.s32.totalorder %s1220, 37
          %s1222 = scalar_select %p1221, %s1220, 37
          %s1223 = smul.addr %s1222, 8
          %s1224 = scalar_lea.vmem %s7, %s1223
        $region68: #{tpu_custom_call.1} parent=63 // pred_fallthru
          _
      $region64: #{tpu_custom_call.1} parent=5 // pred_fallthru
        _
    $region6: #{tpu_custom_call.1} parent=1 // loop_footer
      %s21 = sadd.s32 1, %s17
    $region7: #{tpu_custom_call.1} parent=1 // loop_footer_branch
      %16 = sbr.rel target = $region3
    $region8: #{tpu_custom_call.1} parent=1 // loop_exit
      _
    %1225 = vsyncpa [#allocation3], 1
    %s1226 = scalar_lea.sflag [#allocation3], 1
    %1227 = vsyncpa %s1226, 1
    %1228 = vsyncpa [#allocation5], 1

</llo_original>
